<compile_context>
chip_gen: v7x
topology: tpu7x:2x2x1
jax: 0.10.0
libtpu: 0.0.40
codegen_flags: <defaults>
</compile_context>

<pallas_src>
import jax
import jax.numpy as jnp
import numpy as np
from jax.experimental import pallas as pl
from jax.experimental.pallas import tpu as pltpu


def _round_up(x, m):
    return ((x + m - 1) // m) * m


def _lane_pad_multiple():
    """Cout lane padding: 256 for v6e/v7x (256-wide MXU), 128 for v5e."""
    try:
        kind = jax.devices()[0].device_kind.lower()
        if "v5 lite" in kind or "v5e" in kind or "v5lite" in kind:
            return 128
    except Exception:
        pass
    return 256


def _pad_k(k):
    """Contraction-depth (Cin) padding: multiple of 128 for full MXU depth,
    but only when K >= 128 -- padding a tiny Cin (e.g. 4 -> 128) would inflate
    the per-forward input DMA many-fold for no MXU benefit."""
    if k >= 128 and k % 128 != 0:
        return _round_up(k, 128)
    return k


def _tile_config():
    """(row tile, vmem_limit_bytes) per generation.  Conservative (v7x-safe:
    64 MiB physical VMEM / TC) unless a big-VMEM chip (v5e/v6e, 128 MiB) is
    detected, in which case TM=1024 halves the per-step pipeline overhead."""
    tm, vmem = 512, 32 * 1024 * 1024
    try:
        info = pltpu.get_tpu_info()
        if getattr(info, "vmem_capacity_bytes", 0) >= 100 * 1024 * 1024:
            tm, vmem = 1024, 64 * 1024 * 1024
    except Exception:
        pass
    return tm, vmem


# --------------------------------------------------------------------------
# Pallas kernel: fused (x @ W_scaled) + bn_bias, bf16 store
# --------------------------------------------------------------------------
def _downsample_kernel(x_ref, w_ref, b_ref, o_ref):
    # (TM, K) @ (K, Cp) on the MXU with f32 accumulation, then folded-BN bias.
    acc = jnp.dot(x_ref[...], w_ref[...], preferred_element_type=jnp.float32)
    o_ref[...] = (acc + b_ref[...]).astype(o_ref.dtype)


def fused_matmul_bias(x2d, w, bias, *, tm=None, vmem_limit=None,
                      out_dtype=jnp.bfloat16):
    """x2d: (M, K) bf16 pixels; w: (K, Cp) bf16 BN-scale-folded weights;
    bias: (1, Cp) f32.  Returns (M, Cp) `out_dtype` (default bf16)."""
    M, K = x2d.shape
    Kw, Cp = w.shape
    assert K == Kw, (K, Kw)

    if tm is None or vmem_limit is None:
        d_tm, d_vmem = _tile_config()
        tm = tm if tm is not None else d_tm
        vmem_limit = vmem_limit if vmem_limit is not None else d_vmem

    # Row tile: large, multiple of 8; pad M up to a whole grid.
    TM = min(tm, _round_up(M, 8))
    # v7x has 2 TensorCores: make sure the "parallel" axis has >= 2 steps so
    # both cores get work (neutral-cost on single-TC v5e/v6e).
    if M >= 16 and pl.cdiv(M, TM) < 2:
        TM = min(TM, _round_up(pl.cdiv(M, 2), 8))
    grid_m = pl.cdiv(M, TM)
    M_pad = grid_m * TM
    if M_pad != M:
        x2d = jnp.pad(x2d, ((0, M_pad - M), (0, 0)))

    out_itemsize = jnp.dtype(out_dtype).itemsize
    cost = pl.CostEstimate(
        flops=2 * M_pad * K * Cp,
        transcendentals=0,
        bytes_accessed=(x2d.size * x2d.dtype.itemsize
                        + w.size * w.dtype.itemsize
                        + bias.size * bias.dtype.itemsize
                        + M_pad * Cp * out_itemsize),
    )

    def run(single_buffer_consts):
        # Constant index_map -> weights/bias are never re-fetched after step 0;
        # Buffered(1) drops their second buffer from the VMEM budget (v7x win).
        const_kw = ({"pipeline_mode": pl.Buffered(1)}
                    if single_buffer_consts else {})
        return pl.pallas_call(
            _downsample_kernel,
            out_shape=jax.ShapeDtypeStruct((M_pad, Cp), out_dtype),
            grid_spec=pltpu.PrefetchScalarGridSpec(
                num_scalar_prefetch=0,
                grid=(grid_m,),
                in_specs=[
                    pl.BlockSpec((TM, K), lambda i: (i, 0)),            # pixel rows
                    pl.BlockSpec((K, Cp), lambda i: (0, 0), **const_kw),  # weights
                    pl.BlockSpec((1, Cp), lambda i: (0, 0), **const_kw),  # BN bias
                ],
                out_specs=pl.BlockSpec((TM, Cp), lambda i: (i, 0)),
            ),
            compiler_params=pltpu.CompilerParams(
                dimension_semantics=("parallel",),      # independent row tiles
                vmem_limit_bytes=vmem_limit,
            ),
            cost_estimate=cost,
        )(x2d, w, bias)

    try:
        out = run(True)
    except Exception:
        # Fallback for jax builds where BlockSpec pipeline_mode / Buffered(1)
        # is unsupported: identical kernel, default double-buffering.
        out = run(False)
    return out[:M]


# --------------------------------------------------------------------------
# Parameter init (deterministic, synthetic) with BN folding + lane padding
# --------------------------------------------------------------------------
def init_standard_downsample(key, in_channels, out_channels, eps=1e-5):
    k1, k2, k3, k4, k5 = jax.random.split(key, 5)

    # conv1: 1x1, no bias.  PyTorch OIHW (Cout, Cin, 1, 1) == (Cin, Cout) here.
    w = jax.random.normal(k1, (in_channels, out_channels), jnp.float32)
    w = w / jnp.sqrt(float(in_channels))

    # bn1 inference-mode folding: scale = gamma/sqrt(var+eps); bias = beta - mean*scale
    gamma = 1.0 + 0.1 * jax.random.normal(k2, (out_channels,), jnp.float32)
    beta = 0.1 * jax.random.normal(k3, (out_channels,), jnp.float32)
    rmean = 0.05 * jax.random.normal(k4, (out_channels,), jnp.float32)
    rvar = 1.0 + 0.1 * jax.random.uniform(k5, (out_channels,), jnp.float32)
    scale = gamma / jnp.sqrt(rvar + eps)
    bias = beta - rmean * scale

    # Fold scale into the weights; pad Cout to the MXU N-width (256 on v6e/v7x,
    # 128 on v5e) and K to an MXU-depth multiple when large.  Zero pads are inert.
    k_pad = _pad_k(in_channels)
    cout_p = _round_up(out_channels, _lane_pad_multiple())
    w_scaled = w * scale[None, :]
    w_padded = jnp.zeros((k_pad, cout_p), jnp.float32)
    w_padded = w_padded.at[:in_channels, :out_channels].set(w_scaled)
    b_padded = jnp.zeros((1, cout_p), jnp.float32)
    b_padded = b_padded.at[:, :out_channels].set(bias[None, :])

    return {
        "w_f32": w, "scale": scale, "bias": bias,        # reference path
        "w_padded": w_padded.astype(jnp.bfloat16),       # kernel path (bf16)
        "bias_padded": b_padded,                         # kernel path (f32)
        "out_channels": out_channels,
        "in_channels": in_channels,
    }


# --------------------------------------------------------------------------
# StandardDownsample forward (Pallas for the conv/BN math)
# --------------------------------------------------------------------------
def standard_downsample_forward(x_nchw, params, stride):
    # Subsample FIRST (a 1x1 stride-s conv is a spatial subsample), so the
    # NCHW->NHWC transpose only moves the kept pixels (s^2 x less HBM traffic).
    xs = x_nchw[:, :, ::stride, ::stride]
    xs = jnp.transpose(xs, (0, 2, 3, 1))                  # NCHW -> NHWC
    N, Ho, Wo, Cin = xs.shape
    x2d = xs.reshape(N * Ho * Wo, Cin).astype(jnp.bfloat16)

    k_pad = params["w_padded"].shape[0]
    if k_pad != Cin:
        x2d = jnp.pad(x2d, ((0, 0), (0, k_pad - Cin)))    # inert zero K-padding

    y = fused_matmul_bias(x2d, params["w_padded"], params["bias_padded"])

    # Single fused output pass: drop channel padding, reshape, NHWC->NCHW, f32.
    # TODO(synk): if the surrounding graph can stay NHWC (and tolerate padded
    # channels), drop this pass entirely and consume the kernel output directly.
    cout = params["out_channels"]
    y = y[:, :cout].reshape(N, Ho, Wo, cout)
    return jnp.transpose(y, (0, 3, 1, 2)).astype(jnp.float32)   # NHWC -> NCHW


# --------------------------------------------------------------------------
# Pure-JAX reference (lax conv on the same bf16-rounded operands, f32 math,
# final bf16 store to match the kernel's output dtype)
# --------------------------------------------------------------------------
def standard_downsample_reference(x_nchw, params, stride):
    x = jnp.transpose(x_nchw, (0, 2, 3, 1)).astype(jnp.bfloat16).astype(jnp.float32)
    w_scaled = (params["w_f32"] * params["scale"][None, :]).astype(jnp.bfloat16)
    w_hwio = w_scaled.astype(jnp.float32).reshape(1, 1, *w_scaled.shape)
    y = jax.lax.conv_general_dilated(
        x, w_hwio, (stride, stride), ((0, 0), (0, 0)),
        dimension_numbers=("NHWC", "HWIO", "NHWC"))
    y = y + params["bias"][None, None, None, :]
    y = y.astype(jnp.bfloat16).astype(jnp.float32)        # match kernel bf16 store
    return jnp.transpose(y, (0, 3, 1, 2))


# --------------------------------------------------------------------------
if __name__ == "__main__":
    N, C_IN, H, W = 2, 4, 16, 16
    C_OUT, STRIDE = 8, 2

    key = jax.random.PRNGKey(0)
    kx, kp = jax.random.split(key)
    x = jax.random.normal(kx, (N, C_IN, H, W), jnp.float32)   # NCHW like PyTorch
    params = init_standard_downsample(kp, C_IN, C_OUT)

    out = jax.block_until_ready(standard_downsample_forward(x, params, STRIDE))
    ref = jax.block_until_ready(standard_downsample_reference(x, params, STRIDE))

    assert out.shape == (N, C_OUT, H // STRIDE, W // STRIDE), out.shape
    # bf16 output store on both paths; tolerance covers 1-ulp bf16 disagreements
    # from differing f32 accumulation order.
    np.testing.assert_allclose(np.asarray(out), np.asarray(ref),
                               rtol=2e-2, atol=2e-2)

    print("KERNEL_OK")
</pallas_src>

<mosaic_0001>
module attributes {stable_mosaic.version = 11 : i64} {
  func.func @_downsample_kernel(%arg0: i32, %arg1: memref<64x4xbf16, #tpu.memory_space<vmem>>, %arg2: memref<4x256xbf16, #tpu.memory_space<vmem>>, %arg3: memref<1x256xf32, #tpu.memory_space<vmem>>, %arg4: memref<64x256xbf16, #tpu.memory_space<vmem>>) attributes {dimension_semantics = [#tpu.dimension_semantics<parallel>], iteration_bounds = array<i64: 2>, scalar_prefetch = 0 : i64, scratch_operands = 0 : i64, tpu.core_type = #tpu.core_type<tc>, window_params = [{transform_indices = @transform_0, window_bounds = array<i64: 64, 4>}, {pipeline_mode = #tpu.pipeline_mode<synchronous>, transform_indices = @transform_1, window_bounds = array<i64: 4, 256>}, {pipeline_mode = #tpu.pipeline_mode<synchronous>, transform_indices = @transform_2, window_bounds = array<i64: 1, 256>}, {transform_indices = @transform_3, window_bounds = array<i64: 64, 256>}]} {
    %c0 = arith.constant 0 : index
    %c0_0 = arith.constant 0 : index
    %0 = vector.load %arg1[%c0, %c0_0] : memref<64x4xbf16, #tpu.memory_space<vmem>>, vector<64x4xbf16>
    %c0_1 = arith.constant 0 : index
    %c0_2 = arith.constant 0 : index
    %1 = vector.load %arg2[%c0_1, %c0_2] : memref<4x256xbf16, #tpu.memory_space<vmem>>, vector<4x256xbf16>
    %cst = arith.constant dense<0.000000e+00> : vector<64x256xf32>
    %2 = tpu.matmul %0, %1, %cst {dimension_numbers = #tpu.dot_dimension_numbers<[1], [0], [0], [1], [0, 0, 1, 1], [], []>} : vector<64x4xbf16>, vector<4x256xbf16>, vector<64x256xf32> -> vector<64x256xf32>
    %c0_3 = arith.constant 0 : index
    %c0_4 = arith.constant 0 : index
    %3 = vector.load %arg3[%c0_3, %c0_4] : memref<1x256xf32, #tpu.memory_space<vmem>>, vector<1x256xf32>
    %4 = vector.broadcast %3 : vector<1x256xf32> to vector<64x256xf32>
    %5 = arith.addf %2, %4 : vector<64x256xf32>
    %6 = arith.truncf %5 : vector<64x256xf32> to vector<64x256xbf16>
    %c0_5 = arith.constant 0 : index
    %c0_6 = arith.constant 0 : index
    %7 = vector.load %arg4[%c0_5, %c0_6] : memref<64x256xbf16, #tpu.memory_space<vmem>>, vector<64x256xbf16>
    tpu.vector_store %arg4[%c0_5, %c0_6], %6 {strides = array<i32>} : memref<64x256xbf16, #tpu.memory_space<vmem>>, vector<64x256xbf16>,
    return
  }
  func.func @transform_0(%arg0: i32) -> (i32, i32) {
    %c0_i32 = arith.constant 0 : i32
    %c0_i32_0 = arith.constant 0 : i32
    return %arg0, %c0_i32 : i32, i32
  }
  func.func @transform_1(%arg0: i32) -> (i32, i32) {
    %c0_i32 = arith.constant 0 : i32
    %c0_i32_0 = arith.constant 0 : i32
    %c0_i32_1 = arith.constant 0 : i32
    return %c0_i32, %c0_i32_0 : i32, i32
  }
  func.func @transform_2(%arg0: i32) -> (i32, i32) {
    %c0_i32 = arith.constant 0 : i32
    %c0_i32_0 = arith.constant 0 : i32
    %c0_i32_1 = arith.constant 0 : i32
    return %c0_i32, %c0_i32_0 : i32, i32
  }
  func.func @transform_3(%arg0: i32) -> (i32, i32) {
    %c0_i32 = arith.constant 0 : i32
    %c0_i32_0 = arith.constant 0 : i32
    return %arg0, %c0_i32 : i32, i32
  }
}

module attributes {stable_mosaic.version = 11 : i64} {
  func.func @_downsample_kernel(%arg0: i32, %arg1: memref<64x4xbf16, #tpu.memory_space<vmem>>, %arg2: memref<4x256xbf16, #tpu.memory_space<vmem>>, %arg3: memref<1x256xf32, #tpu.memory_space<vmem>>, %arg4: memref<64x256xbf16, #tpu.memory_space<vmem>>) attributes {dimension_semantics = [#tpu.dimension_semantics<parallel>], iteration_bounds = array<i64: 2>, scalar_prefetch = 0 : i64, scratch_operands = 0 : i64, tpu.core_type = #tpu.core_type<tc>, window_params = [{transform_indices = @transform_0, window_bounds = array<i64: 64, 4>}, {pipeline_mode = #tpu.pipeline_mode<synchronous>, transform_indices = @transform_1, window_bounds = array<i64: 4, 256>}, {pipeline_mode = #tpu.pipeline_mode<synchronous>, transform_indices = @transform_2, window_bounds = array<i64: 1, 256>}, {transform_indices = @transform_3, window_bounds = array<i64: 64, 256>}]} {
    %c0 = arith.constant 0 : index
    %c0_0 = arith.constant 0 : index
    %0 = vector.load %arg1[%c0, %c0_0] : memref<64x4xbf16, #tpu.memory_space<vmem>>, vector<64x4xbf16>
    %c0_1 = arith.constant 0 : index
    %c0_2 = arith.constant 0 : index
    %1 = vector.load %arg2[%c0_1, %c0_2] : memref<4x256xbf16, #tpu.memory_space<vmem>>, vector<4x256xbf16>
    %cst = arith.constant dense<0.000000e+00> : vector<64x256xf32>
    %2 = tpu.matmul %0, %1, %cst {dimension_numbers = #tpu.dot_dimension_numbers<[1], [0], [0], [1], [0, 0, 1, 1], [], []>} : vector<64x4xbf16>, vector<4x256xbf16>, vector<64x256xf32> -> vector<64x256xf32>
    %c0_3 = arith.constant 0 : index
    %c0_4 = arith.constant 0 : index
    %3 = vector.load %arg3[%c0_3, %c0_4] : memref<1x256xf32, #tpu.memory_space<vmem>>, vector<1x256xf32>
    %4 = vector.broadcast %3 : vector<1x256xf32> to vector<64x256xf32>
    %5 = arith.addf %2, %4 : vector<64x256xf32>
    %6 = arith.truncf %5 : vector<64x256xf32> to vector<64x256xbf16>
    %c0_5 = arith.constant 0 : index
    %c0_6 = arith.constant 0 : index
    %7 = vector.load %arg4[%c0_5, %c0_6] : memref<64x256xbf16, #tpu.memory_space<vmem>>, vector<64x256xbf16>
    tpu.vector_store %arg4[%c0_5, %c0_6], %6 {strides = array<i32>} : memref<64x256xbf16, #tpu.memory_space<vmem>>, vector<64x256xbf16>,
    return
  }
  func.func @transform_0(%arg0: i32) -> (i32, i32) {
    %c0_i32 = arith.constant 0 : i32
    %c0_i32_0 = arith.constant 0 : i32
    return %arg0, %c0_i32 : i32, i32
  }
  func.func @transform_1(%arg0: i32) -> (i32, i32) {
    %c0_i32 = arith.constant 0 : i32
    %c0_i32_0 = arith.constant 0 : i32
    %c0_i32_1 = arith.constant 0 : i32
    return %c0_i32, %c0_i32_0 : i32, i32
  }
  func.func @transform_2(%arg0: i32) -> (i32, i32) {
    %c0_i32 = arith.constant 0 : i32
    %c0_i32_0 = arith.constant 0 : i32
    %c0_i32_1 = arith.constant 0 : i32
    return %c0_i32, %c0_i32_0 : i32, i32
  }
  func.func @transform_3(%arg0: i32) -> (i32, i32) {
    %c0_i32 = arith.constant 0 : i32
    %c0_i32_0 = arith.constant 0 : i32
    return %arg0, %c0_i32 : i32, i32
  }
}

</mosaic_0001>

<llo_original>
// kernel: tpu_custom_call.1
$region0: #{tpu_custom_call.1}
  #allocation0 [shape = 'u32[]', space=smem, size = 0x4, offset = 0x4, fixed_abs, tag = 'smem constant byte address 0x4 - core index']
  #allocation1 [shape = 'u32[144,128]{1,0:T(1,128)}', space=vmem, size = 0x12000, scoped, tag = 'internal scratch']
  %s0 = inlined_call_operand.vmem [shape: bf16[128,4], index: 0, kind: input, shape index: {}]
  %s1 = inlined_call_operand.vmem [shape: bf16[4,256], index: 1, kind: input, shape index: {}]
  %s2 = inlined_call_operand.vmem [shape: f32[1,256], index: 2, kind: input, shape index: {}]
  %s3 = inlined_call_operand.hbm [shape: bf16[128,256], index: 3, kind: output, shape index: {}]
  %s4 = sld [smem:[#allocation0]]
  $region45: #{tpu_custom_call.1} parent=0
    _
  %s6 = ssub.s32 1, %s4
  %s7 = scalar_select 0, %s6, %s4
  $region1: #{tpu_custom_call.1} parent=0
    #allocation2 [shape = 'u8[65536]{0}', space=vmem, size = 0x10000, scoped, tag = 'output window, operand 0']
    #allocation3 [shape = 's32[2]{0}', space=sflag, size = 0x8, scoped, tag = 'scoped memory for tpu_custom_call.1']
    %8 = vsyncpa [#allocation3], 0
    %s9 = scalar_lea.sflag [#allocation3], 1
    %10 = vsyncpa %s9, 0
    loop: start=0, step=1, limit=4
    $region2: #{tpu_custom_call.1} parent=1 // loop_pre_header
      _
    $region3: #{tpu_custom_call.1} parent=1 // loop_header
      %s12 = sphi 0, %s16
      %p13 = scmp.ge.s32.totalorder %s12, 4
      %s22 = sphi 0, %s24
      %s25 = sphi 0, %s22
      %s26 = sphi 0, %s25
      %s42 = sphi 0, %s26
      %s46 = sphi 0, %s46
      %s48 = sphi 0, %s46
      %s49 = sphi 0, %s48
      %s63 = sphi 0, %s49
      %s67 = sphi 0, %s67
      %s69 = sphi 0, %s67
      %s70 = sphi 0, %s69
      %s84 = sphi 0, %s70
      %s90 = sphi 0, %s92
      %s93 = sphi 0, %s90
      %s94 = sphi 0, %s93
      %s110 = sphi 0, %s94
    $region4: #{tpu_custom_call.1} parent=1 // loop_header_branch
      %15 = sbr.rel (%p13) target = $region8
    $region5: #{tpu_custom_call.1} parent=1 // loop_body
      %s17 = ssub.s32 %s12, 1
      %s18 = ssub.s32 %s12, 2
      %s19 = sadd.s32 %s12, 1
      %s20 = ssub.s32 %s12, %s19
      %p21 = scmp.eq.s32.totalorder %s20, 0
      %s23 = sadd.s32 %s22, 1
      %s24 = scalar_select %p21, %s22, %s23
      %p27 = pneg %p21
      %p28 = scmp.eq.s32.totalorder %s12, 1
      %p29 = por %p27, %p28
      %p30 = scmp.ne.s32.totalorder %s22, %s25
      %p31 = scmp.eq.s32.totalorder %s12, 0
      %p32 = por %p30, %p31
      %p33 = scmp.ne.s32.totalorder %s22, %s25
      %p34 = scmp.eq.s32.totalorder %s17, 1
      %p35 = por %p33, %p34
      %p36 = scmp.ne.s32.totalorder %s25, %s26
      %p37 = scmp.eq.s32.totalorder %s17, 0
      %p38 = por %p36, %p37
      %p39 = scmp.ne.s32.totalorder %s25, %s26
      %p40 = scmp.eq.s32.totalorder %s18, 1
      %p41 = por %p39, %p40
      %p43 = scmp.ne.s32.totalorder %s26, %s42
      %p44 = scmp.eq.s32.totalorder %s18, 0
      %p45 = por %p43, %p44
      %s47 = sadd.s32 %s46, 1
      %p50 = scmp.eq.s32.totalorder %s12, 1
      %p51 = scmp.ne.s32.totalorder %s46, %s48
      %p52 = scmp.eq.s32.totalorder %s12, 0
      %p53 = por %p51, %p52
      %p54 = scmp.ne.s32.totalorder %s46, %s48
      %p55 = scmp.eq.s32.totalorder %s17, 1
      %p56 = por %p54, %p55
      %p57 = scmp.ne.s32.totalorder %s48, %s49
      %p58 = scmp.eq.s32.totalorder %s17, 0
      %p59 = por %p57, %p58
      %p60 = scmp.ne.s32.totalorder %s48, %s49
      %p61 = scmp.eq.s32.totalorder %s18, 1
      %p62 = por %p60, %p61
      %p64 = scmp.ne.s32.totalorder %s49, %s63
      %p65 = scmp.eq.s32.totalorder %s18, 0
      %p66 = por %p64, %p65
      %s68 = sadd.s32 %s67, 1
      %p71 = scmp.eq.s32.totalorder %s12, 1
      %p72 = scmp.ne.s32.totalorder %s67, %s69
      %p73 = scmp.eq.s32.totalorder %s12, 0
      %p74 = por %p72, %p73
      %p75 = scmp.ne.s32.totalorder %s67, %s69
      %p76 = scmp.eq.s32.totalorder %s17, 1
      %p77 = por %p75, %p76
      %p78 = scmp.ne.s32.totalorder %s69, %s70
      %p79 = scmp.eq.s32.totalorder %s17, 0
      %p80 = por %p78, %p79
      %p81 = scmp.ne.s32.totalorder %s69, %s70
      %p82 = scmp.eq.s32.totalorder %s18, 1
      %p83 = por %p81, %p82
      %p85 = scmp.ne.s32.totalorder %s70, %s84
      %p86 = scmp.eq.s32.totalorder %s18, 0
      %p87 = por %p85, %p86
      %s88 = ssub.s32 %s12, %s19
      %p89 = scmp.eq.s32.totalorder %s88, 0
      %s91 = sadd.s32 %s90, 1
      %s92 = scalar_select %p89, %s90, %s91
      %p95 = pneg %p89
      %p96 = scmp.eq.s32.totalorder %s12, 1
      %p97 = por %p95, %p96
      %p98 = scmp.ne.s32.totalorder %s90, %s93
      %p99 = scmp.eq.s32.totalorder %s12, 0
      %p100 = por %p98, %p99
      %p101 = scmp.ne.s32.totalorder %s90, %s93
      %p102 = scmp.eq.s32.totalorder %s17, 1
      %p103 = por %p101, %p102
      %p104 = scmp.ne.s32.totalorder %s93, %s94
      %p105 = scmp.eq.s32.totalorder %s17, 0
      %p106 = por %p104, %p105
      %p107 = scmp.ne.s32.totalorder %s93, %s94
      %p108 = scmp.eq.s32.totalorder %s18, 1
      %p109 = por %p107, %p108
      %p111 = scmp.ne.s32.totalorder %s94, %s110
      %p112 = scmp.eq.s32.totalorder %s18, 0
      %p113 = por %p111, %p112
      %p114 = scmp.le.s32.totalorder 1, %s12
      %p115 = scmp.lt.s32.totalorder %s12, 3
      %p116 = pnand %p114, %p115
      %p117 = pneg %p116
      // Predicated region
      $region9: #{tpu_custom_call.1} parent=5 // pred_check
        _
      $region10: #{tpu_custom_call.1} parent=5 // pred_check_branch
        %119 = sbr.rel (%p116) target = $region12
      $region11: #{tpu_custom_call.1} parent=5 // pred_region
        %s120 = ssub.s32 %s12, 1
        // Predicated region
        $region13: #{tpu_custom_call.1} parent=11 // pred_check
          %p121 = pneg %p59
        $region14: #{tpu_custom_call.1} parent=11 // pred_check_branch
          %123 = sbr.rel (%p121) target = $region16
        $region15: #{tpu_custom_call.1} parent=11 // pred_region
          _
        $region16: #{tpu_custom_call.1} parent=11 // pred_fallthru
          _
        // Predicated region
        $region17: #{tpu_custom_call.1} parent=11 // pred_check
          %p124 = pneg %p80
        $region18: #{tpu_custom_call.1} parent=11 // pred_check_branch
          %126 = sbr.rel (%p124) target = $region20
        $region19: #{tpu_custom_call.1} parent=11 // pred_region
          _
        $region20: #{tpu_custom_call.1} parent=11 // pred_fallthru
          _
      $region12: #{tpu_custom_call.1} parent=5 // pred_fallthru
        _
      %p127 = scmp.lt.s32.totalorder %s12, 2
      // Predicated region
      $region21: #{tpu_custom_call.1} parent=5 // pred_check
        %p128 = pneg %p127
      $region22: #{tpu_custom_call.1} parent=5 // pred_check_branch
        %130 = sbr.rel (%p128) target = $region24
      $region23: #{tpu_custom_call.1} parent=5 // pred_region
        // Predicated region
        $region25: #{tpu_custom_call.1} parent=23 // pred_check
          %p131 = pneg %p32
        $region26: #{tpu_custom_call.1} parent=23 // pred_check_branch
          %133 = sbr.rel (%p131) target = $region28
        $region27: #{tpu_custom_call.1} parent=23 // pred_region
          %s134 = smul.u32 8, %s12
          %p135 = scmp.lt.s32.totalorder %s134, 15
          %s136 = scalar_select %p135, %s134, 15
          %s137 = smul.addr %s136, 4
          %s138 = scalar_lea.vmem %s0, %s137
          %s139 = smul.u32 8, %s12
        $region28: #{tpu_custom_call.1} parent=23 // pred_fallthru
          _
      $region24: #{tpu_custom_call.1} parent=5 // pred_fallthru
        _
      %p140 = scmp.le.s32.totalorder 1, %s12
      %p141 = scmp.lt.s32.totalorder %s12, 3
      %p142 = pnand %p140, %p141
      %p143 = pneg %p142
      // Predicated region
      $region29: #{tpu_custom_call.1} parent=5 // pred_check
        _
      $region30: #{tpu_custom_call.1} parent=5 // pred_check_branch
        %145 = sbr.rel (%p142) target = $region32
      $region31: #{tpu_custom_call.1} parent=5 // pred_region
        %s146 = ssub.s32 %s12, 1
        %s147 = smul.u32 8, %s17
        %p148 = scmp.lt.s32.totalorder %s147, 15
        %s149 = scalar_select %p148, %s147, 15
        %s150 = smul.addr %s149, 4
        %s151 = scalar_lea.vmem %s0, %s150
        %p152 = pneg %p38
        %p153 = pneg %p35
        %p154 = pneg %p59
        %p155 = pneg %p56
        %p156 = pneg %p80
        %p157 = pneg %p77
        %p158 = pneg %p106
        %p159 = pneg %p103
        %s160 = sand.u32 %s93, 1
        %s161 = scalar_lea.sflag [#allocation3], %s160
        %s162 = sand.u32 %s93, 1
        %s163 = smul.addr %s162, 64
        %s164 = scalar_lea.vmem [#allocation2], %s163
        %s165 = smul.u32 8, %s17
        %p166 = scmp.lt.s32.totalorder %s165, 15
        %s167 = scalar_select %p166, %s165, 15
        %s168 = smul.addr %s167, 4
        %s169 = scalar_lea.vmem %s0, %s168
        %s170 = smul.u32 8, %s17
        %s171 = smul.u32 8, %s17
        %v173 = vld [vmem:[%s169] sm:$0xf]
        %v174 = vld [vmem:[%s169 + $0x4] sm:$0xf]
        %v175 = vld [vmem:[%s169 + $0x8] sm:$0xf]
        %v176 = vld [vmem:[%s169 + $0xc] sm:$0xf]
        %v177 = vld [vmem:[%s169 + $0x10] sm:$0xf]
        %v178 = vld [vmem:[%s169 + $0x14] sm:$0xf]
        %v179 = vld [vmem:[%s169 + $0x18] sm:$0xf]
        %v180 = vld [vmem:[%s169 + $0x1c] sm:$0xf]
        %v181 = vld [vmem:[%s1] sm:$0xf]
        %v182 = vld [vmem:[%s2] sm:$0x3]
        %v184 = vlaneseq
        %v185 = vshrl.u32 %v184, 7
        %v186 = vsub.s32 0, %v185
        %v187 = vrot.slane %v182, %v186
        %v188 = vlaneseq
        %v189 = vshrl.u32 %v188, 7
        %v190 = vsub.s32 1, %v189
        %v191 = vrot.slane %v182, %v190
        %v202 = vunpack.c.l.b16 %v173
        %v203 = vunpack.c.l.b16 %v174
        %v204 = vunpack.c.l.b16 %v175
        %v205 = vunpack.c.l.b16 %v176
        %v206 = vunpack.c.l.b16 %v177
        %v207 = vunpack.c.l.b16 %v178
        %v208 = vunpack.c.l.b16 %v179
        %v209 = vunpack.c.l.b16 %v180
        %v210 = vpack.c.b16 %v203, %v202
        %v211 = vpack.c.b16 %v205, %v204
        %v212 = vpack.c.b16 %v207, %v206
        %v213 = vpack.c.b16 %v209, %v208
        %v216 = vunpack.c.l.s4 1983009808
        %v217 = vunpack.c.0.s8 %v216
        %v218 = vlaneseq
        %v219 = vshrl.u32 %v218, 7
        %v220 = vsub.s32 %v217, %v219
        %v221 = vrot.slane %v181, %v220
        %v222 = vcombine.high %v221, %v221
        %vm223 = vcmask 31744
        %v225 = vsel %vm223, %v210, 0
        %v228 = vsel %vm223, %v211, 0
        %v231 = vsel %vm223, %v212, 0
        %v234 = vsel %vm223, %v213, 0
        %vm236 = vcmask 1041408
        %v238 = vsel %vm236, %v221, 0
        %v241 = vsel %vm236, %v222, 0
        %243 = vmatprep.subr.bf16.mxu0 %v241
        %244 = vmatpush1.bf16.msra.mxu0 %v238
        %245 = vmatprep.subr.bf16.mxu0 0
        %246 = vmatpush1.bf16.msra.mxu0 0
        %247 = vmatprep.subr.bf16.mxu0 0
        %248 = vmatpush1.bf16.msra.mxu0 0
        %249 = vmatprep.subr.bf16.mxu0 0
        %250 = vmatpush1.bf16.msra.mxu0 0
        %251 = vmatprep.subr.bf16.mxu0 0
        %252 = vmatpush1.bf16.msra.mxu0 0
        %253 = vmatprep.subr.bf16.mxu0 0
        %254 = vmatpush1.bf16.msra.mxu0 0
        %255 = vmatprep.subr.bf16.mxu0 0
        %256 = vmatpush1.bf16.msra.mxu0 0
        %257 = vmatprep.subr.bf16.mxu0 0
        %258 = vmatpush1.bf16.msra.mxu0 0
        %259 = vmatprep.subr.bf16.mxu0 0
        %260 = vmatpush1.bf16.msra.mxu0 0
        %261 = vmatprep.subr.bf16.mxu0 0
        %262 = vmatpush1.bf16.msra.mxu0 0
        %263 = vmatprep.subr.bf16.mxu0 0
        %264 = vmatpush1.bf16.msra.mxu0 0
        %265 = vmatprep.subr.bf16.mxu0 0
        %266 = vmatpush1.bf16.msra.mxu0 0
        %267 = vmatprep.subr.bf16.mxu0 0
        %268 = vmatpush1.bf16.msra.mxu0 0
        %269 = vmatprep.subr.bf16.mxu0 0
        %270 = vmatpush1.bf16.msra.mxu0 0
        %271 = vmatprep.subr.bf16.mxu0 0
        %272 = vmatpush1.bf16.msra.mxu0 0
        %273 = vmatprep.subr.bf16.mxu0 0
        %274 = vmatpush1.bf16.msra.mxu0 0
        %275 = vmatprep.mubr.bf16.mxu0 0
        %276 = vmatmul.mubr.bf16.gmra.mrb[0].mxu0 %v225
        %v277 = vpop.f32.mrb[0].mxu0
        %v278 = vadd.f32 %v187, %v277
        %v279 = vpop.f32.mrb[0].mxu0
        %v280 = vadd.f32 %v191, %v279
        %v281 = vpop.f32.mrb[0].mxu0
        %v282 = vadd.f32 %v187, %v281
        %v283 = vpop.f32.mrb[0].mxu0
        %v284 = vadd.f32 %v191, %v283
        %285 = vmatprep.mubr.bf16.mxu0 0
        %286 = vmatmul.mubr.bf16.gmra.mrb[0].mxu0 %v228
        %v287 = vpop.f32.mrb[0].mxu0
        %v288 = vadd.f32 %v187, %v287
        %v289 = vpop.f32.mrb[0].mxu0
        %v290 = vadd.f32 %v191, %v289
        %v291 = vpop.f32.mrb[0].mxu0
        %v292 = vadd.f32 %v187, %v291
        %v293 = vpop.f32.mrb[0].mxu0
        %v294 = vadd.f32 %v191, %v293
        %295 = vmatprep.mubr.bf16.mxu0 0
        %296 = vmatmul.mubr.bf16.gmra.mrb[0].mxu0 %v231
        %v297 = vpop.f32.mrb[0].mxu0
        %v298 = vadd.f32 %v187, %v297
        %v299 = vpop.f32.mrb[0].mxu0
        %v300 = vadd.f32 %v191, %v299
        %v301 = vpop.f32.mrb[0].mxu0
        %v302 = vadd.f32 %v187, %v301
        %v303 = vpop.f32.mrb[0].mxu0
        %v304 = vadd.f32 %v191, %v303
        %305 = vmatprep.mubr.bf16.mxu0 0
        %306 = vmatmul.mubr.bf16.gmra.mrb[0].mxu0 %v234
        %v307 = vpop.f32.mrb[0].mxu0
        %v308 = vadd.f32 %v187, %v307
        %v309 = vpop.f32.mrb[0].mxu0
        %v310 = vadd.f32 %v191, %v309
        %v311 = vpop.f32.mrb[0].mxu0
        %v312 = vadd.f32 %v187, %v311
        %v313 = vpop.f32.mrb[0].mxu0
        %v314 = vadd.f32 %v191, %v313
        %315 = vdwg.mxu0
        %v316 = vpack.c.bf16 %v282, %v278
        %v317 = vpack.c.bf16 %v284, %v280
        %v318 = vpack.c.bf16 %v292, %v288
        %v319 = vpack.c.bf16 %v294, %v290
        %v320 = vpack.c.bf16 %v302, %v298
        %v321 = vpack.c.bf16 %v304, %v300
        %v322 = vpack.c.bf16 %v312, %v308
        %v323 = vpack.c.bf16 %v314, %v310
        %v332 = vunpack.c.l.b16 %v316
        %v333 = vunpack.c.l.b16 %v317
        %v334 = vunpack.c.h.b16 %v316
        %v335 = vunpack.c.h.b16 %v317
        %v336 = vunpack.c.l.b16 %v318
        %v337 = vunpack.c.l.b16 %v319
        %v338 = vunpack.c.h.b16 %v318
        %v339 = vunpack.c.h.b16 %v319
        %v340 = vunpack.c.l.b16 %v320
        %v341 = vunpack.c.l.b16 %v321
        %v342 = vunpack.c.h.b16 %v320
        %v343 = vunpack.c.h.b16 %v321
        %v344 = vunpack.c.l.b16 %v322
        %v345 = vunpack.c.l.b16 %v323
        %v346 = vunpack.c.h.b16 %v322
        %v347 = vunpack.c.h.b16 %v323
        %v348 = vpack.c.b16 %v333, %v332
        %v349 = vpack.c.b16 %v335, %v334
        %v350 = vpack.c.b16 %v337, %v336
        %v351 = vpack.c.b16 %v339, %v338
        %v352 = vpack.c.b16 %v341, %v340
        %v353 = vpack.c.b16 %v343, %v342
        %v354 = vpack.c.b16 %v345, %v344
        %v355 = vpack.c.b16 %v347, %v346
        %364 = vst [vmem:[%s164] sm:$0xff] %v348
        %365 = vst [vmem:[%s164 + $0x8] sm:$0xff] %v349
        %366 = vst [vmem:[%s164 + $0x10] sm:$0xff] %v350
        %367 = vst [vmem:[%s164 + $0x18] sm:$0xff] %v351
        %368 = vst [vmem:[%s164 + $0x20] sm:$0xff] %v352
        %369 = vst [vmem:[%s164 + $0x28] sm:$0xff] %v353
        %370 = vst [vmem:[%s164 + $0x30] sm:$0xff] %v354
        %371 = vst [vmem:[%s164 + $0x38] sm:$0xff] %v355
        %s372 = sand.u32 %s93, 1
        %s373 = scalar_lea.sflag [#allocation3], %s372
        %s374 = sand.u32 %s93, 1
        %s375 = smul.addr %s374, 64
        %s376 = scalar_lea.vmem [#allocation2], %s375
        // Predicated region
        $region33: #{tpu_custom_call.1} parent=31 // pred_check
          %p377 = pneg %p103
        $region34: #{tpu_custom_call.1} parent=31 // pred_check_branch
          %379 = sbr.rel (%p377) target = $region36
        $region35: #{tpu_custom_call.1} parent=31 // pred_region
          %s380 = smul.u32 8, %s17
          %s382 = ssub.s32 1024, 1024
          %383 = vsyncadd %s373, %s382
          %s384 = smul.addr %s380, 2
          %s385 = smul.addr %s384, 64
          %s386 = scalar_lea.hbm %s3, %s385
          %s387 = sshll.u32 %s376, 4
          %s388 = int_to_ptr.vmem [resolvable:$true] %s387
          %393 = dma.vmem_to_hbm [thread:$0]  %s388, 1024, %s386, %s373, 128, 128, 8
        $region36: #{tpu_custom_call.1} parent=31 // pred_fallthru
          _
      $region32: #{tpu_custom_call.1} parent=5 // pred_fallthru
        _
      %p394 = scmp.le.s32.totalorder 2, %s12
      // Predicated region
      $region37: #{tpu_custom_call.1} parent=5 // pred_check
        %p395 = pneg %p394
      $region38: #{tpu_custom_call.1} parent=5 // pred_check_branch
        %397 = sbr.rel (%p395) target = $region40
      $region39: #{tpu_custom_call.1} parent=5 // pred_region
        %s398 = ssub.s32 %s12, 2
        // Predicated region
        $region41: #{tpu_custom_call.1} parent=39 // pred_check
          %p399 = pneg %p109
        $region42: #{tpu_custom_call.1} parent=39 // pred_check_branch
          %401 = sbr.rel (%p399) target = $region44
        $region43: #{tpu_custom_call.1} parent=39 // pred_region
          %s402 = sand.u32 %s94, 1
          %s403 = scalar_lea.sflag [#allocation3], %s402
          %s404 = sand.u32 %s94, 1
          %s405 = smul.addr %s404, 64
          %s406 = scalar_lea.vmem [#allocation2], %s405
          %407 = dma.done %s403, 1024
        $region44: #{tpu_custom_call.1} parent=39 // pred_fallthru
          _
      $region40: #{tpu_custom_call.1} parent=5 // pred_fallthru
        _
    $region6: #{tpu_custom_call.1} parent=1 // loop_footer
      %s16 = sadd.s32 1, %s12
    $region7: #{tpu_custom_call.1} parent=1 // loop_footer_branch
      %11 = sbr.rel target = $region3
    $region8: #{tpu_custom_call.1} parent=1 // loop_exit
      _
    %408 = vsyncpa [#allocation3], 1
    %s409 = scalar_lea.sflag [#allocation3], 1
    %410 = vsyncpa %s409, 1

// kernel: tpu_custom_call.1
$region0: #{tpu_custom_call.1}
  #allocation0 [shape = 'u32[]', space=smem, size = 0x4, offset = 0x4, fixed_abs, tag = 'smem constant byte address 0x4 - core index']
  #allocation1 [shape = 'u32[144,128]{1,0:T(1,128)}', space=vmem, size = 0x12000, scoped, tag = 'internal scratch']
  %s0 = inlined_call_operand.vmem [shape: bf16[128,4], index: 0, kind: input, shape index: {}]
  %s1 = inlined_call_operand.vmem [shape: bf16[4,256], index: 1, kind: input, shape index: {}]
  %s2 = inlined_call_operand.vmem [shape: f32[1,256], index: 2, kind: input, shape index: {}]
  %s3 = inlined_call_operand.hbm [shape: bf16[128,256], index: 3, kind: output, shape index: {}]
  %s4 = sld [smem:[#allocation0]]
  $region45: #{tpu_custom_call.1} parent=0
    _
  %s6 = ssub.s32 1, %s4
  %s7 = scalar_select 0, %s6, %s4
  $region1: #{tpu_custom_call.1} parent=0
    #allocation2 [shape = 'u8[65536]{0}', space=vmem, size = 0x10000, scoped, tag = 'output window, operand 0']
    #allocation3 [shape = 's32[2]{0}', space=sflag, size = 0x8, scoped, tag = 'scoped memory for tpu_custom_call.1']
    %8 = vsyncpa [#allocation3], 0
    %s9 = scalar_lea.sflag [#allocation3], 1
    %10 = vsyncpa %s9, 0
    loop: start=0, step=1, limit=4
    $region2: #{tpu_custom_call.1} parent=1 // loop_pre_header
      _
    $region3: #{tpu_custom_call.1} parent=1 // loop_header
      %s12 = sphi 0, %s16
      %p13 = scmp.ge.s32.totalorder %s12, 4
      %s22 = sphi 0, %s24
      %s25 = sphi 0, %s22
      %s26 = sphi 0, %s25
      %s42 = sphi 0, %s26
      %s46 = sphi 0, %s46
      %s48 = sphi 0, %s46
      %s49 = sphi 0, %s48
      %s63 = sphi 0, %s49
      %s67 = sphi 0, %s67
      %s69 = sphi 0, %s67
      %s70 = sphi 0, %s69
      %s84 = sphi 0, %s70
      %s90 = sphi 0, %s92
      %s93 = sphi 0, %s90
      %s94 = sphi 0, %s93
      %s110 = sphi 0, %s94
    $region4: #{tpu_custom_call.1} parent=1 // loop_header_branch
      %15 = sbr.rel (%p13) target = $region8
    $region5: #{tpu_custom_call.1} parent=1 // loop_body
      %s17 = ssub.s32 %s12, 1
      %s18 = ssub.s32 %s12, 2
      %s19 = sadd.s32 %s12, 1
      %s20 = ssub.s32 %s12, %s19
      %p21 = scmp.eq.s32.totalorder %s20, 0
      %s23 = sadd.s32 %s22, 1
      %s24 = scalar_select %p21, %s22, %s23
      %p27 = pneg %p21
      %p28 = scmp.eq.s32.totalorder %s12, 1
      %p29 = por %p27, %p28
      %p30 = scmp.ne.s32.totalorder %s22, %s25
      %p31 = scmp.eq.s32.totalorder %s12, 0
      %p32 = por %p30, %p31
      %p33 = scmp.ne.s32.totalorder %s22, %s25
      %p34 = scmp.eq.s32.totalorder %s17, 1
      %p35 = por %p33, %p34
      %p36 = scmp.ne.s32.totalorder %s25, %s26
      %p37 = scmp.eq.s32.totalorder %s17, 0
      %p38 = por %p36, %p37
      %p39 = scmp.ne.s32.totalorder %s25, %s26
      %p40 = scmp.eq.s32.totalorder %s18, 1
      %p41 = por %p39, %p40
      %p43 = scmp.ne.s32.totalorder %s26, %s42
      %p44 = scmp.eq.s32.totalorder %s18, 0
      %p45 = por %p43, %p44
      %s47 = sadd.s32 %s46, 1
      %p50 = scmp.eq.s32.totalorder %s12, 1
      %p51 = scmp.ne.s32.totalorder %s46, %s48
      %p52 = scmp.eq.s32.totalorder %s12, 0
      %p53 = por %p51, %p52
      %p54 = scmp.ne.s32.totalorder %s46, %s48
      %p55 = scmp.eq.s32.totalorder %s17, 1
      %p56 = por %p54, %p55
      %p57 = scmp.ne.s32.totalorder %s48, %s49
      %p58 = scmp.eq.s32.totalorder %s17, 0
      %p59 = por %p57, %p58
      %p60 = scmp.ne.s32.totalorder %s48, %s49
      %p61 = scmp.eq.s32.totalorder %s18, 1
      %p62 = por %p60, %p61
      %p64 = scmp.ne.s32.totalorder %s49, %s63
      %p65 = scmp.eq.s32.totalorder %s18, 0
      %p66 = por %p64, %p65
      %s68 = sadd.s32 %s67, 1
      %p71 = scmp.eq.s32.totalorder %s12, 1
      %p72 = scmp.ne.s32.totalorder %s67, %s69
      %p73 = scmp.eq.s32.totalorder %s12, 0
      %p74 = por %p72, %p73
      %p75 = scmp.ne.s32.totalorder %s67, %s69
      %p76 = scmp.eq.s32.totalorder %s17, 1
      %p77 = por %p75, %p76
      %p78 = scmp.ne.s32.totalorder %s69, %s70
      %p79 = scmp.eq.s32.totalorder %s17, 0
      %p80 = por %p78, %p79
      %p81 = scmp.ne.s32.totalorder %s69, %s70
      %p82 = scmp.eq.s32.totalorder %s18, 1
      %p83 = por %p81, %p82
      %p85 = scmp.ne.s32.totalorder %s70, %s84
      %p86 = scmp.eq.s32.totalorder %s18, 0
      %p87 = por %p85, %p86
      %s88 = ssub.s32 %s12, %s19
      %p89 = scmp.eq.s32.totalorder %s88, 0
      %s91 = sadd.s32 %s90, 1
      %s92 = scalar_select %p89, %s90, %s91
      %p95 = pneg %p89
      %p96 = scmp.eq.s32.totalorder %s12, 1
      %p97 = por %p95, %p96
      %p98 = scmp.ne.s32.totalorder %s90, %s93
      %p99 = scmp.eq.s32.totalorder %s12, 0
      %p100 = por %p98, %p99
      %p101 = scmp.ne.s32.totalorder %s90, %s93
      %p102 = scmp.eq.s32.totalorder %s17, 1
      %p103 = por %p101, %p102
      %p104 = scmp.ne.s32.totalorder %s93, %s94
      %p105 = scmp.eq.s32.totalorder %s17, 0
      %p106 = por %p104, %p105
      %p107 = scmp.ne.s32.totalorder %s93, %s94
      %p108 = scmp.eq.s32.totalorder %s18, 1
      %p109 = por %p107, %p108
      %p111 = scmp.ne.s32.totalorder %s94, %s110
      %p112 = scmp.eq.s32.totalorder %s18, 0
      %p113 = por %p111, %p112
      %p114 = scmp.le.s32.totalorder 1, %s12
      %p115 = scmp.lt.s32.totalorder %s12, 3
      %p116 = pnand %p114, %p115
      %p117 = pneg %p116
      // Predicated region
      $region9: #{tpu_custom_call.1} parent=5 // pred_check
        _
      $region10: #{tpu_custom_call.1} parent=5 // pred_check_branch
        %119 = sbr.rel (%p116) target = $region12
      $region11: #{tpu_custom_call.1} parent=5 // pred_region
        %s120 = ssub.s32 %s12, 1
        // Predicated region
        $region13: #{tpu_custom_call.1} parent=11 // pred_check
          %p121 = pneg %p59
        $region14: #{tpu_custom_call.1} parent=11 // pred_check_branch
          %123 = sbr.rel (%p121) target = $region16
        $region15: #{tpu_custom_call.1} parent=11 // pred_region
          _
        $region16: #{tpu_custom_call.1} parent=11 // pred_fallthru
          _
        // Predicated region
        $region17: #{tpu_custom_call.1} parent=11 // pred_check
          %p124 = pneg %p80
        $region18: #{tpu_custom_call.1} parent=11 // pred_check_branch
          %126 = sbr.rel (%p124) target = $region20
        $region19: #{tpu_custom_call.1} parent=11 // pred_region
          _
        $region20: #{tpu_custom_call.1} parent=11 // pred_fallthru
          _
      $region12: #{tpu_custom_call.1} parent=5 // pred_fallthru
        _
      %p127 = scmp.lt.s32.totalorder %s12, 2
      // Predicated region
      $region21: #{tpu_custom_call.1} parent=5 // pred_check
        %p128 = pneg %p127
      $region22: #{tpu_custom_call.1} parent=5 // pred_check_branch
        %130 = sbr.rel (%p128) target = $region24
      $region23: #{tpu_custom_call.1} parent=5 // pred_region
        // Predicated region
        $region25: #{tpu_custom_call.1} parent=23 // pred_check
          %p131 = pneg %p32
        $region26: #{tpu_custom_call.1} parent=23 // pred_check_branch
          %133 = sbr.rel (%p131) target = $region28
        $region27: #{tpu_custom_call.1} parent=23 // pred_region
          %s134 = smul.u32 8, %s12
          %p135 = scmp.lt.s32.totalorder %s134, 15
          %s136 = scalar_select %p135, %s134, 15
          %s137 = smul.addr %s136, 4
          %s138 = scalar_lea.vmem %s0, %s137
          %s139 = smul.u32 8, %s12
        $region28: #{tpu_custom_call.1} parent=23 // pred_fallthru
          _
      $region24: #{tpu_custom_call.1} parent=5 // pred_fallthru
        _
      %p140 = scmp.le.s32.totalorder 1, %s12
      %p141 = scmp.lt.s32.totalorder %s12, 3
      %p142 = pnand %p140, %p141
      %p143 = pneg %p142
      // Predicated region
      $region29: #{tpu_custom_call.1} parent=5 // pred_check
        _
      $region30: #{tpu_custom_call.1} parent=5 // pred_check_branch
        %145 = sbr.rel (%p142) target = $region32
      $region31: #{tpu_custom_call.1} parent=5 // pred_region
        %s146 = ssub.s32 %s12, 1
        %s147 = smul.u32 8, %s17
        %p148 = scmp.lt.s32.totalorder %s147, 15
        %s149 = scalar_select %p148, %s147, 15
        %s150 = smul.addr %s149, 4
        %s151 = scalar_lea.vmem %s0, %s150
        %p152 = pneg %p38
        %p153 = pneg %p35
        %p154 = pneg %p59
        %p155 = pneg %p56
        %p156 = pneg %p80
        %p157 = pneg %p77
        %p158 = pneg %p106
        %p159 = pneg %p103
        %s160 = sand.u32 %s93, 1
        %s161 = scalar_lea.sflag [#allocation3], %s160
        %s162 = sand.u32 %s93, 1
        %s163 = smul.addr %s162, 64
        %s164 = scalar_lea.vmem [#allocation2], %s163
        %s165 = smul.u32 8, %s17
        %p166 = scmp.lt.s32.totalorder %s165, 15
        %s167 = scalar_select %p166, %s165, 15
        %s168 = smul.addr %s167, 4
        %s169 = scalar_lea.vmem %s0, %s168
        %s170 = smul.u32 8, %s17
        %s171 = smul.u32 8, %s17
        %v173 = vld [vmem:[%s169] sm:$0xf]
        %v174 = vld [vmem:[%s169 + $0x4] sm:$0xf]
        %v175 = vld [vmem:[%s169 + $0x8] sm:$0xf]
        %v176 = vld [vmem:[%s169 + $0xc] sm:$0xf]
        %v177 = vld [vmem:[%s169 + $0x10] sm:$0xf]
        %v178 = vld [vmem:[%s169 + $0x14] sm:$0xf]
        %v179 = vld [vmem:[%s169 + $0x18] sm:$0xf]
        %v180 = vld [vmem:[%s169 + $0x1c] sm:$0xf]
        %v181 = vld [vmem:[%s1] sm:$0xf]
        %v182 = vld [vmem:[%s2] sm:$0x3]
        %v184 = vlaneseq
        %v185 = vshrl.u32 %v184, 7
        %v186 = vsub.s32 0, %v185
        %v187 = vrot.slane %v182, %v186
        %v188 = vlaneseq
        %v189 = vshrl.u32 %v188, 7
        %v190 = vsub.s32 1, %v189
        %v191 = vrot.slane %v182, %v190
        %v202 = vunpack.c.l.b16 %v173
        %v203 = vunpack.c.l.b16 %v174
        %v204 = vunpack.c.l.b16 %v175
        %v205 = vunpack.c.l.b16 %v176
        %v206 = vunpack.c.l.b16 %v177
        %v207 = vunpack.c.l.b16 %v178
        %v208 = vunpack.c.l.b16 %v179
        %v209 = vunpack.c.l.b16 %v180
        %v210 = vpack.c.b16 %v203, %v202
        %v211 = vpack.c.b16 %v205, %v204
        %v212 = vpack.c.b16 %v207, %v206
        %v213 = vpack.c.b16 %v209, %v208
        %v216 = vunpack.c.l.s4 1983009808
        %v217 = vunpack.c.0.s8 %v216
        %v218 = vlaneseq
        %v219 = vshrl.u32 %v218, 7
        %v220 = vsub.s32 %v217, %v219
        %v221 = vrot.slane %v181, %v220
        %v222 = vcombine.high %v221, %v221
        %vm223 = vcmask 31744
        %v225 = vsel %vm223, %v210, 0
        %v228 = vsel %vm223, %v211, 0
        %v231 = vsel %vm223, %v212, 0
        %v234 = vsel %vm223, %v213, 0
        %vm236 = vcmask 1041408
        %v238 = vsel %vm236, %v221, 0
        %v241 = vsel %vm236, %v222, 0
        %243 = vmatprep.subr.bf16.mxu0 %v241
        %244 = vmatpush1.bf16.msra.mxu0 %v238
        %245 = vmatprep.subr.bf16.mxu0 0
        %246 = vmatpush1.bf16.msra.mxu0 0
        %247 = vmatprep.subr.bf16.mxu0 0
        %248 = vmatpush1.bf16.msra.mxu0 0
        %249 = vmatprep.subr.bf16.mxu0 0
        %250 = vmatpush1.bf16.msra.mxu0 0
        %251 = vmatprep.subr.bf16.mxu0 0
        %252 = vmatpush1.bf16.msra.mxu0 0
        %253 = vmatprep.subr.bf16.mxu0 0
        %254 = vmatpush1.bf16.msra.mxu0 0
        %255 = vmatprep.subr.bf16.mxu0 0
        %256 = vmatpush1.bf16.msra.mxu0 0
        %257 = vmatprep.subr.bf16.mxu0 0
        %258 = vmatpush1.bf16.msra.mxu0 0
        %259 = vmatprep.subr.bf16.mxu0 0
        %260 = vmatpush1.bf16.msra.mxu0 0
        %261 = vmatprep.subr.bf16.mxu0 0
        %262 = vmatpush1.bf16.msra.mxu0 0
        %263 = vmatprep.subr.bf16.mxu0 0
        %264 = vmatpush1.bf16.msra.mxu0 0
        %265 = vmatprep.subr.bf16.mxu0 0
        %266 = vmatpush1.bf16.msra.mxu0 0
        %267 = vmatprep.subr.bf16.mxu0 0
        %268 = vmatpush1.bf16.msra.mxu0 0
        %269 = vmatprep.subr.bf16.mxu0 0
        %270 = vmatpush1.bf16.msra.mxu0 0
        %271 = vmatprep.subr.bf16.mxu0 0
        %272 = vmatpush1.bf16.msra.mxu0 0
        %273 = vmatprep.subr.bf16.mxu0 0
        %274 = vmatpush1.bf16.msra.mxu0 0
        %275 = vmatprep.mubr.bf16.mxu0 0
        %276 = vmatmul.mubr.bf16.gmra.mrb[0].mxu0 %v225
        %v277 = vpop.f32.mrb[0].mxu0
        %v278 = vadd.f32 %v187, %v277
        %v279 = vpop.f32.mrb[0].mxu0
        %v280 = vadd.f32 %v191, %v279
        %v281 = vpop.f32.mrb[0].mxu0
        %v282 = vadd.f32 %v187, %v281
        %v283 = vpop.f32.mrb[0].mxu0
        %v284 = vadd.f32 %v191, %v283
        %285 = vmatprep.mubr.bf16.mxu0 0
        %286 = vmatmul.mubr.bf16.gmra.mrb[0].mxu0 %v228
        %v287 = vpop.f32.mrb[0].mxu0
        %v288 = vadd.f32 %v187, %v287
        %v289 = vpop.f32.mrb[0].mxu0
        %v290 = vadd.f32 %v191, %v289
        %v291 = vpop.f32.mrb[0].mxu0
        %v292 = vadd.f32 %v187, %v291
        %v293 = vpop.f32.mrb[0].mxu0
        %v294 = vadd.f32 %v191, %v293
        %295 = vmatprep.mubr.bf16.mxu0 0
        %296 = vmatmul.mubr.bf16.gmra.mrb[0].mxu0 %v231
        %v297 = vpop.f32.mrb[0].mxu0
        %v298 = vadd.f32 %v187, %v297
        %v299 = vpop.f32.mrb[0].mxu0
        %v300 = vadd.f32 %v191, %v299
        %v301 = vpop.f32.mrb[0].mxu0
        %v302 = vadd.f32 %v187, %v301
        %v303 = vpop.f32.mrb[0].mxu0
        %v304 = vadd.f32 %v191, %v303
        %305 = vmatprep.mubr.bf16.mxu0 0
        %306 = vmatmul.mubr.bf16.gmra.mrb[0].mxu0 %v234
        %v307 = vpop.f32.mrb[0].mxu0
        %v308 = vadd.f32 %v187, %v307
        %v309 = vpop.f32.mrb[0].mxu0
        %v310 = vadd.f32 %v191, %v309
        %v311 = vpop.f32.mrb[0].mxu0
        %v312 = vadd.f32 %v187, %v311
        %v313 = vpop.f32.mrb[0].mxu0
        %v314 = vadd.f32 %v191, %v313
        %315 = vdwg.mxu0
        %v316 = vpack.c.bf16 %v282, %v278
        %v317 = vpack.c.bf16 %v284, %v280
        %v318 = vpack.c.bf16 %v292, %v288
        %v319 = vpack.c.bf16 %v294, %v290
        %v320 = vpack.c.bf16 %v302, %v298
        %v321 = vpack.c.bf16 %v304, %v300
        %v322 = vpack.c.bf16 %v312, %v308
        %v323 = vpack.c.bf16 %v314, %v310
        %v332 = vunpack.c.l.b16 %v316
        %v333 = vunpack.c.l.b16 %v317
        %v334 = vunpack.c.h.b16 %v316
        %v335 = vunpack.c.h.b16 %v317
        %v336 = vunpack.c.l.b16 %v318
        %v337 = vunpack.c.l.b16 %v319
        %v338 = vunpack.c.h.b16 %v318
        %v339 = vunpack.c.h.b16 %v319
        %v340 = vunpack.c.l.b16 %v320
        %v341 = vunpack.c.l.b16 %v321
        %v342 = vunpack.c.h.b16 %v320
        %v343 = vunpack.c.h.b16 %v321
        %v344 = vunpack.c.l.b16 %v322
        %v345 = vunpack.c.l.b16 %v323
        %v346 = vunpack.c.h.b16 %v322
        %v347 = vunpack.c.h.b16 %v323
        %v348 = vpack.c.b16 %v333, %v332
        %v349 = vpack.c.b16 %v335, %v334
        %v350 = vpack.c.b16 %v337, %v336
        %v351 = vpack.c.b16 %v339, %v338
        %v352 = vpack.c.b16 %v341, %v340
        %v353 = vpack.c.b16 %v343, %v342
        %v354 = vpack.c.b16 %v345, %v344
        %v355 = vpack.c.b16 %v347, %v346
        %364 = vst [vmem:[%s164] sm:$0xff] %v348
        %365 = vst [vmem:[%s164 + $0x8] sm:$0xff] %v349
        %366 = vst [vmem:[%s164 + $0x10] sm:$0xff] %v350
        %367 = vst [vmem:[%s164 + $0x18] sm:$0xff] %v351
        %368 = vst [vmem:[%s164 + $0x20] sm:$0xff] %v352
        %369 = vst [vmem:[%s164 + $0x28] sm:$0xff] %v353
        %370 = vst [vmem:[%s164 + $0x30] sm:$0xff] %v354
        %371 = vst [vmem:[%s164 + $0x38] sm:$0xff] %v355
        %s372 = sand.u32 %s93, 1
        %s373 = scalar_lea.sflag [#allocation3], %s372
        %s374 = sand.u32 %s93, 1
        %s375 = smul.addr %s374, 64
        %s376 = scalar_lea.vmem [#allocation2], %s375
        // Predicated region
        $region33: #{tpu_custom_call.1} parent=31 // pred_check
          %p377 = pneg %p103
        $region34: #{tpu_custom_call.1} parent=31 // pred_check_branch
          %379 = sbr.rel (%p377) target = $region36
        $region35: #{tpu_custom_call.1} parent=31 // pred_region
          %s380 = smul.u32 8, %s17
          %s382 = ssub.s32 1024, 1024
          %383 = vsyncadd %s373, %s382
          %s384 = smul.addr %s380, 2
          %s385 = smul.addr %s384, 64
          %s386 = scalar_lea.hbm %s3, %s385
          %s387 = sshll.u32 %s376, 4
          %s388 = int_to_ptr.vmem [resolvable:$true] %s387
          %393 = dma.vmem_to_hbm [thread:$0]  %s388, 1024, %s386, %s373, 128, 128, 8
        $region36: #{tpu_custom_call.1} parent=31 // pred_fallthru
          _
      $region32: #{tpu_custom_call.1} parent=5 // pred_fallthru
        _
      %p394 = scmp.le.s32.totalorder 2, %s12
      // Predicated region
      $region37: #{tpu_custom_call.1} parent=5 // pred_check
        %p395 = pneg %p394
      $region38: #{tpu_custom_call.1} parent=5 // pred_check_branch
        %397 = sbr.rel (%p395) target = $region40
      $region39: #{tpu_custom_call.1} parent=5 // pred_region
        %s398 = ssub.s32 %s12, 2
        // Predicated region
        $region41: #{tpu_custom_call.1} parent=39 // pred_check
          %p399 = pneg %p109
        $region42: #{tpu_custom_call.1} parent=39 // pred_check_branch
          %401 = sbr.rel (%p399) target = $region44
        $region43: #{tpu_custom_call.1} parent=39 // pred_region
          %s402 = sand.u32 %s94, 1
          %s403 = scalar_lea.sflag [#allocation3], %s402
          %s404 = sand.u32 %s94, 1
          %s405 = smul.addr %s404, 64
          %s406 = scalar_lea.vmem [#allocation2], %s405
          %407 = dma.done %s403, 1024
        $region44: #{tpu_custom_call.1} parent=39 // pred_fallthru
          _
      $region40: #{tpu_custom_call.1} parent=5 // pred_fallthru
        _
    $region6: #{tpu_custom_call.1} parent=1 // loop_footer
      %s16 = sadd.s32 1, %s12
    $region7: #{tpu_custom_call.1} parent=1 // loop_footer_branch
      %11 = sbr.rel target = $region3
    $region8: #{tpu_custom_call.1} parent=1 // loop_exit
      _
    %408 = vsyncpa [#allocation3], 1
    %s409 = scalar_lea.sflag [#allocation3], 1
    %410 = vsyncpa %s409, 1

</llo_original>
